<compile_context>
chip_gen: v6e
topology: v6e:2x2x1
jax: 0.10.0
libtpu: 0.0.40
codegen_flags: <defaults>
</compile_context>

<pallas_src>
import jax
import jax.numpy as jnp
from jax.experimental import pallas as pl
from jax.experimental.pallas import tpu as pltpu

BN_EPS = 1e-5       # PyTorch BatchNorm1d default eps
OUT_DIM = 206       # hard-coded in the module: nn.Linear(dim_hidden1, 206)
LANE = 128
SUBLANE = 8
DEFAULT_TILE_B = 1024


def _round_up(n, m):
    return ((n + m - 1) // m) * m


def _vmem_budget_bytes():
    """Generation-aware VMEM budget with headroom for Mosaic scratch."""
    cap = 64 << 20                      # conservative fallback: v7x per-TC VMEM
    try:
        info = pltpu.get_tpu_info()
        cap = int(getattr(info, "vmem_capacity_bytes", cap) or cap)
    except Exception:
        pass
    # 3/4 of physical: ~48 MiB on v7x, ~96 MiB on v5e/v6e (128 MiB parts).
    return max(24 << 20, (cap * 3) // 4)


# ----------------------------------------------------------------------------
# Kernels
# ----------------------------------------------------------------------------
def _mlp_kernel_two_inputs(x_ref, lf_ref, w1x_ref, w1l_ref, b1_ref,
                           w2_ref, b2_ref, out1_ref, out2_ref):
    """h = x@W1x + lower_f@W1l + b1 ; out2 = ReLU(h)@W2 + b2 (BN pre-folded)."""
    # TODO(synk): nn.Dropout(0.2) is identity at inference; stochastic
    # training-mode dropout is not implemented here.
    h = (jnp.dot(x_ref[...], w1x_ref[...], preferred_element_type=jnp.float32)
         + jnp.dot(lf_ref[...], w1l_ref[...], preferred_element_type=jnp.float32)
         + b1_ref[...])
    out1_ref[...] = h.astype(out1_ref.dtype)
    a = jnp.maximum(h, 0.0).astype(w2_ref.dtype)       # ReLU, keep 2nd matmul MXU-native
    y = jnp.dot(a, w2_ref[...], preferred_element_type=jnp.float32) + b2_ref[...]
    out2_ref[...] = y.astype(out2_ref.dtype)


def _mlp_kernel_one_input(x_ref, w1_ref, b1_ref, w2_ref, b2_ref,
                          out1_ref, out2_ref):
    """Variant for lower_f is None (no BN, no concat): only 5 inputs DMA'd."""
    h = jnp.dot(x_ref[...], w1_ref[...], preferred_element_type=jnp.float32) + b1_ref[...]
    out1_ref[...] = h.astype(out1_ref.dtype)
    a = jnp.maximum(h, 0.0).astype(w2_ref.dtype)
    y = jnp.dot(a, w2_ref[...], preferred_element_type=jnp.float32) + b2_ref[...]
    out2_ref[...] = y.astype(out2_ref.dtype)


# ----------------------------------------------------------------------------
# Wrapper
# ----------------------------------------------------------------------------
def mlp_1hidlay_forward(x, lower_f, p, *, tile_b=DEFAULT_TILE_B,
                        use_bf16=True, out_dtype=None):
    """Returns (out1, out2) exactly like MLP_1HidLay.forward (eval mode).

    use_bf16=True streams x/lower_f/W1/W2 and the two outputs in bf16
    (f32 accumulation on the MXU); set use_bf16=False for full-f32 numerics.
    """
    apply_bn = lower_f is not None
    B, feat_d = x.shape
    H1 = p["w1"].shape[1]
    compute_dtype = jnp.bfloat16 if use_bf16 else jnp.float32
    out_dtype = compute_dtype if out_dtype is None else out_dtype

    # -------- host-side (one-time) parameter preparation --------------------
    w1 = p["w1"]
    b1 = p["b1"]
    if apply_bn:
        # Fold eval-mode BatchNorm1d into the first Linear:
        #   xn = (x - mean) * scale + beta,  scale = gamma * rsqrt(var + eps)
        #   xn @ W1 + b1 == x @ (scale^T * W1) + (beta - mean*scale) @ W1 + b1
        scale = p["bn2_gamma"] * jax.lax.rsqrt(p["bn2_var"] + BN_EPS)  # (1, dim_in)
        w1 = w1 * scale.reshape(-1, 1)
        b1 = b1 + (p["bn2_beta"] - p["bn2_mean"] * scale) @ p["w1"]

    # Lane-dense (multiple-of-128) padding for hidden and output widths so the
    # kernel issues unmasked vector stores and full MXU columns.
    h1_pad = _round_up(H1, LANE)
    out_pad = _round_up(OUT_DIM, LANE)
    w1p = jnp.pad(w1, ((0, 0), (0, h1_pad - H1))).astype(compute_dtype)
    b1p = jnp.pad(b1, ((0, 0), (0, h1_pad - H1)))                     # bias stays f32
    w2p = jnp.pad(p["w2"], ((0, h1_pad - H1), (0, out_pad - OUT_DIM))).astype(compute_dtype)
    b2p = jnp.pad(p["b2"], ((0, 0), (0, out_pad - OUT_DIM)))          # bias stays f32

    x = x.astype(compute_dtype)
    lf_dim = 0
    if apply_bn:
        lower_f = lower_f.astype(compute_dtype)
        lf_dim = lower_f.shape[1]

    # -------- batch tiling ---------------------------------------------------
    in_bytes = jnp.dtype(compute_dtype).itemsize
    ob = jnp.dtype(out_dtype).itemsize
    # bf16 packs 16 rows per sublane group; keep bf16 tiles 16-row aligned.
    row_align = 16 if in_bytes == 2 else SUBLANE

    tb = max(int(tile_b), row_align)
    if B >= 8 * 2048:
        tb = max(tb, 2048)                          # let the tile grow with B
    # >= 2 grid steps when B allows: both v7x TensorCores busy + DMA overlap.
    tb = min(tb, _round_up(-(-B // 2), row_align))
    tb = _round_up(max(tb, row_align), row_align)

    weight_bytes = (w1p.size + w2p.size) * in_bytes + (b1p.size + b2p.size) * 4
    budget = _vmem_budget_bytes()

    def _need(t):
        return (2 * weight_bytes                                   # resident weights (dbl-buffered)
                + 2 * t * (feat_d + lf_dim) * in_bytes             # input double-buffers
                + 2 * t * (h1_pad + out_pad) * ob)                 # output double-buffers

    # Shrink the tile if the footprint would not fit the chip's VMEM budget.
    while _need(tb) + (8 << 20) > budget and tb > row_align:
        tb = _round_up(max(tb // 2, row_align), row_align)

    b_padded = _round_up(B, tb)
    if b_padded != B:
        x = jnp.pad(x, ((0, b_padded - B), (0, 0)))
        if apply_bn:
            lower_f = jnp.pad(lower_f, ((0, b_padded - B), (0, 0)))
    grid = (b_padded // tb,)

    vmem_limit = int(min(max(_need(tb) + (8 << 20), 32 << 20), budget))

    # -------- cost estimate (lets XLA overlap surrounding pads/casts) -------
    dim_in = feat_d + lf_dim
    flops = 2 * b_padded * (dim_in * h1_pad + h1_pad * out_pad)
    bytes_accessed = (b_padded * dim_in * in_bytes + weight_bytes
                      + b_padded * (h1_pad + out_pad) * ob)
    cost = pl.CostEstimate(flops=int(flops), transcendentals=0,
                           bytes_accessed=int(bytes_accessed))

    out_shape = (jax.ShapeDtypeStruct((b_padded, h1_pad), out_dtype),
                 jax.ShapeDtypeStruct((b_padded, out_pad), out_dtype))
    out_specs = (pl.BlockSpec((tb, h1_pad), lambda i: (i, 0)),
                 pl.BlockSpec((tb, out_pad), lambda i: (i, 0)))
    compiler_params = pltpu.CompilerParams(
        dimension_semantics=("parallel",),          # megacore sharding on v7x
        vmem_limit_bytes=vmem_limit,
    )

    if apply_bn:
        # Split W1 row-wise so the concat never materializes in HBM.
        w1xp = w1p[:feat_d]
        w1lp = w1p[feat_d:]
        in_specs = [
            pl.BlockSpec((tb, feat_d), lambda i: (i, 0)),          # x tile
            pl.BlockSpec((tb, lf_dim), lambda i: (i, 0)),          # lower_f tile
            pl.BlockSpec(w1xp.shape, lambda i: (0, 0)),            # W1[:feat_d] resident
            pl.BlockSpec(w1lp.shape, lambda i: (0, 0)),            # W1[feat_d:] resident
            pl.BlockSpec(b1p.shape, lambda i: (0, 0)),
            pl.BlockSpec(w2p.shape, lambda i: (0, 0)),
            pl.BlockSpec(b2p.shape, lambda i: (0, 0)),
        ]
        kernel = _mlp_kernel_two_inputs
        args = (x, lower_f, w1xp, w1lp, b1p, w2p, b2p)
    else:
        in_specs = [
            pl.BlockSpec((tb, feat_d), lambda i: (i, 0)),
            pl.BlockSpec(w1p.shape, lambda i: (0, 0)),
            pl.BlockSpec(b1p.shape, lambda i: (0, 0)),
            pl.BlockSpec(w2p.shape, lambda i: (0, 0)),
            pl.BlockSpec(b2p.shape, lambda i: (0, 0)),
        ]
        kernel = _mlp_kernel_one_input
        args = (x, w1p, b1p, w2p, b2p)

    out1p, out2p = pl.pallas_call(
        kernel,
        out_shape=out_shape,
        grid=grid,
        in_specs=in_specs,
        out_specs=out_specs,
        compiler_params=compiler_params,
        cost_estimate=cost,
    )(*args)

    # Slice padded batch rows and padded lane columns back off.
    return out1p[:B, :H1], out2p[:B, :OUT_DIM]


# ----------------------------------------------------------------------------
# Synthetic parameters + pure-JAX reference
# ----------------------------------------------------------------------------
def init_params(key, dim_in, dim_hidden1):
    """Deterministic synthetic parameter init (shapes match the nn.Module)."""
    ks = jax.random.split(key, 8)
    scale1 = 1.0 / jnp.sqrt(dim_in)
    scale2 = 1.0 / jnp.sqrt(dim_hidden1)
    return {
        # layer1: nn.Linear(dim_in, dim_hidden1)  (stored transposed: (in, out))
        "w1": jax.random.uniform(ks[0], (dim_in, dim_hidden1), jnp.float32,
                                 -scale1, scale1),
        "b1": jax.random.uniform(ks[1], (1, dim_hidden1), jnp.float32,
                                 -scale1, scale1),
        # layer2: nn.Linear(dim_hidden1, 206)
        "w2": jax.random.uniform(ks[2], (dim_hidden1, OUT_DIM), jnp.float32,
                                 -scale2, scale2),
        "b2": jax.random.uniform(ks[3], (1, OUT_DIM), jnp.float32,
                                 -scale2, scale2),
        # bn2: nn.BatchNorm1d(dim_in)  (eval-mode running stats)
        "bn2_gamma": 1.0 + 0.1 * jax.random.normal(ks[4], (1, dim_in), jnp.float32),
        "bn2_beta":  0.1 * jax.random.normal(ks[5], (1, dim_in), jnp.float32),
        "bn2_mean":  0.1 * jax.random.normal(ks[6], (1, dim_in), jnp.float32),
        "bn2_var":   jnp.abs(1.0 + 0.1 * jax.random.normal(ks[7], (1, dim_in),
                                                           jnp.float32)),
        # NOTE: self.bn (BatchNorm1d(dim_hidden1)) is defined in __init__ but
        # never used in forward, so it is intentionally omitted.
    }


def _reference_forward(x, lower_f, p):
    xc = jnp.concatenate([x, lower_f], axis=1) if lower_f is not None else x
    if lower_f is not None:
        xc = (xc - p["bn2_mean"]) / jnp.sqrt(p["bn2_var"] + BN_EPS) \
             * p["bn2_gamma"] + p["bn2_beta"]
    h = xc @ p["w1"] + p["b1"]
    y = jnp.maximum(h, 0.0) @ p["w2"] + p["b2"]
    return h, y


if __name__ == "__main__":
    # Small shapes consistent with get_model(stage>0): dim_in = feat_d + hidden
    batch, feat_d, hidden = 8, 16, 32
    dim_in = feat_d + hidden          # 48
    dim_hidden1 = hidden              # 32

    key = jax.random.PRNGKey(0)
    kx, klf, kp, kp0 = jax.random.split(key, 4)
    x = jax.random.normal(kx, (batch, feat_d), jnp.float32)
    lower_f = jax.random.normal(klf, (batch, hidden), jnp.float32)
    params = init_params(kp, dim_in, dim_hidden1)
    ref1, ref2 = _reference_forward(x, lower_f, params)

    # --- stage > 0 path, default bf16 streaming ------------------------------
    out1, out2 = mlp_1hidlay_forward(x, lower_f, params)          # use_bf16=True
    out1 = jax.block_until_ready(out1)
    out2 = jax.block_until_ready(out2)
    assert out1.shape == (batch, dim_hidden1) and out2.shape == (batch, OUT_DIM)
    assert jnp.allclose(out1.astype(jnp.float32), ref1, atol=5e-2, rtol=5e-2)
    assert jnp.allclose(out2.astype(jnp.float32), ref2, atol=5e-2, rtol=5e-2)

    # --- stage > 0 path, full f32 (tight numerics) ---------------------------
    out1f, out2f = mlp_1hidlay_forward(x, lower_f, params, use_bf16=False)
    out1f = jax.block_until_ready(out1f)
    out2f = jax.block_until_ready(out2f)
    assert jnp.allclose(out1f, ref1, atol=1e-4, rtol=1e-4)
    assert jnp.allclose(out2f, ref2, atol=1e-4, rtol=1e-4)

    # --- stage == 0 path: lower_f is None (no BN, no concat), f32 -----------
    params0 = init_params(kp0, feat_d, dim_hidden1)
    o1, o2 = mlp_1hidlay_forward(x, None, params0, use_bf16=False)
    o1 = jax.block_until_ready(o1)
    o2 = jax.block_until_ready(o2)
    r1, r2 = _reference_forward(x, None, params0)
    assert jnp.allclose(o1, r1, atol=1e-4, rtol=1e-4)
    assert jnp.allclose(o2, r2, atol=1e-4, rtol=1e-4)

    print("KERNEL_OK")
</pallas_src>

<mosaic_0001>
module attributes {stable_mosaic.version = 11 : i64} {
  func.func @_mlp_kernel_two_inputs(%arg0: i32, %arg1: memref<16x16xbf16, #tpu.memory_space<vmem>>, %arg2: memref<16x32xbf16, #tpu.memory_space<vmem>>, %arg3: memref<16x128xbf16, #tpu.memory_space<vmem>>, %arg4: memref<32x128xbf16, #tpu.memory_space<vmem>>, %arg5: memref<1x128xf32, #tpu.memory_space<vmem>>, %arg6: memref<128x256xbf16, #tpu.memory_space<vmem>>, %arg7: memref<1x256xf32, #tpu.memory_space<vmem>>, %arg8: memref<16x128xbf16, #tpu.memory_space<vmem>>, %arg9: memref<16x256xbf16, #tpu.memory_space<vmem>>) attributes {dimension_semantics = [#tpu.dimension_semantics<parallel>], iteration_bounds = array<i64: 1>, scalar_prefetch = 0 : i64, scratch_operands = 0 : i64, tpu.core_type = #tpu.core_type<tc>, window_params = [{transform_indices = @transform_0, window_bounds = array<i64: 16, 16>}, {transform_indices = @transform_1, window_bounds = array<i64: 16, 32>}, {pipeline_mode = #tpu.pipeline_mode<synchronous>, transform_indices = @transform_2, window_bounds = array<i64: 16, 128>}, {pipeline_mode = #tpu.pipeline_mode<synchronous>, transform_indices = @transform_3, window_bounds = array<i64: 32, 128>}, {pipeline_mode = #tpu.pipeline_mode<synchronous>, transform_indices = @transform_4, window_bounds = array<i64: 1, 128>}, {pipeline_mode = #tpu.pipeline_mode<synchronous>, transform_indices = @transform_5, window_bounds = array<i64: 128, 256>}, {pipeline_mode = #tpu.pipeline_mode<synchronous>, transform_indices = @transform_6, window_bounds = array<i64: 1, 256>}, {transform_indices = @transform_7, window_bounds = array<i64: 16, 128>}, {transform_indices = @transform_8, window_bounds = array<i64: 16, 256>}]} {
    %c0 = arith.constant 0 : index
    %c0_0 = arith.constant 0 : index
    %0 = vector.load %arg1[%c0, %c0_0] : memref<16x16xbf16, #tpu.memory_space<vmem>>, vector<16x16xbf16>
    %c0_1 = arith.constant 0 : index
    %c0_2 = arith.constant 0 : index
    %1 = vector.load %arg3[%c0_1, %c0_2] : memref<16x128xbf16, #tpu.memory_space<vmem>>, vector<16x128xbf16>
    %cst = arith.constant dense<0.000000e+00> : vector<16x128xf32>
    %2 = tpu.matmul %0, %1, %cst {dimension_numbers = #tpu.dot_dimension_numbers<[1], [0], [0], [1], [0, 0, 1, 1], [], []>} : vector<16x16xbf16>, vector<16x128xbf16>, vector<16x128xf32> -> vector<16x128xf32>
    %c0_3 = arith.constant 0 : index
    %c0_4 = arith.constant 0 : index
    %3 = vector.load %arg2[%c0_3, %c0_4] : memref<16x32xbf16, #tpu.memory_space<vmem>>, vector<16x32xbf16>
    %c0_5 = arith.constant 0 : index
    %c0_6 = arith.constant 0 : index
    %4 = vector.load %arg4[%c0_5, %c0_6] : memref<32x128xbf16, #tpu.memory_space<vmem>>, vector<32x128xbf16>
    %cst_7 = arith.constant dense<0.000000e+00> : vector<16x128xf32>
    %5 = tpu.matmul %3, %4, %cst_7 {dimension_numbers = #tpu.dot_dimension_numbers<[1], [0], [0], [1], [0, 0, 1, 1], [], []>} : vector<16x32xbf16>, vector<32x128xbf16>, vector<16x128xf32> -> vector<16x128xf32>
    %6 = arith.addf %2, %5 : vector<16x128xf32>
    %c0_8 = arith.constant 0 : index
    %c0_9 = arith.constant 0 : index
    %7 = vector.load %arg5[%c0_8, %c0_9] : memref<1x128xf32, #tpu.memory_space<vmem>>, vector<1x128xf32>
    %8 = vector.broadcast %7 : vector<1x128xf32> to vector<16x128xf32>
    %9 = arith.addf %6, %8 : vector<16x128xf32>
    %10 = arith.truncf %9 : vector<16x128xf32> to vector<16x128xbf16>
    %c0_10 = arith.constant 0 : index
    %c0_11 = arith.constant 0 : index
    %11 = vector.load %arg8[%c0_10, %c0_11] : memref<16x128xbf16, #tpu.memory_space<vmem>>, vector<16x128xbf16>
    tpu.vector_store %arg8[%c0_10, %c0_11], %10 {strides = array<i32>} : memref<16x128xbf16, #tpu.memory_space<vmem>>, vector<16x128xbf16>,
    %cst_12 = arith.constant 0.000000e+00 : f32
    %12 = vector.broadcast %cst_12 : f32 to vector<16x128xf32>
    %13 = arith.maximumf %9, %12 : vector<16x128xf32>
    %14 = arith.truncf %13 : vector<16x128xf32> to vector<16x128xbf16>
    %c0_13 = arith.constant 0 : index
    %c0_14 = arith.constant 0 : index
    %15 = vector.load %arg6[%c0_13, %c0_14] : memref<128x256xbf16, #tpu.memory_space<vmem>>, vector<128x256xbf16>
    %cst_15 = arith.constant dense<0.000000e+00> : vector<16x256xf32>
    %16 = tpu.matmul %14, %15, %cst_15 {dimension_numbers = #tpu.dot_dimension_numbers<[1], [0], [0], [1], [0, 0, 1, 1], [], []>} : vector<16x128xbf16>, vector<128x256xbf16>, vector<16x256xf32> -> vector<16x256xf32>
    %c0_16 = arith.constant 0 : index
    %c0_17 = arith.constant 0 : index
    %17 = vector.load %arg7[%c0_16, %c0_17] : memref<1x256xf32, #tpu.memory_space<vmem>>, vector<1x256xf32>
    %18 = vector.broadcast %17 : vector<1x256xf32> to vector<16x256xf32>
    %19 = arith.addf %16, %18 : vector<16x256xf32>
    %20 = arith.truncf %19 : vector<16x256xf32> to vector<16x256xbf16>
    %c0_18 = arith.constant 0 : index
    %c0_19 = arith.constant 0 : index
    %21 = vector.load %arg9[%c0_18, %c0_19] : memref<16x256xbf16, #tpu.memory_space<vmem>>, vector<16x256xbf16>
    tpu.vector_store %arg9[%c0_18, %c0_19], %20 {strides = array<i32>} : memref<16x256xbf16, #tpu.memory_space<vmem>>, vector<16x256xbf16>,
    return
  }
  func.func @transform_0(%arg0: i32) -> (i32, i32) {
    %c0_i32 = arith.constant 0 : i32
    %c0_i32_0 = arith.constant 0 : i32
    return %arg0, %c0_i32 : i32, i32
  }
  func.func @transform_1(%arg0: i32) -> (i32, i32) {
    %c0_i32 = arith.constant 0 : i32
    %c0_i32_0 = arith.constant 0 : i32
    return %arg0, %c0_i32 : i32, i32
  }
  func.func @transform_2(%arg0: i32) -> (i32, i32) {
    %c0_i32 = arith.constant 0 : i32
    %c0_i32_0 = arith.constant 0 : i32
    %c0_i32_1 = arith.constant 0 : i32
    return %c0_i32, %c0_i32_0 : i32, i32
  }
  func.func @transform_3(%arg0: i32) -> (i32, i32) {
    %c0_i32 = arith.constant 0 : i32
    %c0_i32_0 = arith.constant 0 : i32
    %c0_i32_1 = arith.constant 0 : i32
    return %c0_i32, %c0_i32_0 : i32, i32
  }
  func.func @transform_4(%arg0: i32) -> (i32, i32) {
    %c0_i32 = arith.constant 0 : i32
    %c0_i32_0 = arith.constant 0 : i32
    %c0_i32_1 = arith.constant 0 : i32
    return %c0_i32, %c0_i32_0 : i32, i32
  }
  func.func @transform_5(%arg0: i32) -> (i32, i32) {
    %c0_i32 = arith.constant 0 : i32
    %c0_i32_0 = arith.constant 0 : i32
    %c0_i32_1 = arith.constant 0 : i32
    return %c0_i32, %c0_i32_0 : i32, i32
  }
  func.func @transform_6(%arg0: i32) -> (i32, i32) {
    %c0_i32 = arith.constant 0 : i32
    %c0_i32_0 = arith.constant 0 : i32
    %c0_i32_1 = arith.constant 0 : i32
    return %c0_i32, %c0_i32_0 : i32, i32
  }
  func.func @transform_7(%arg0: i32) -> (i32, i32) {
    %c0_i32 = arith.constant 0 : i32
    %c0_i32_0 = arith.constant 0 : i32
    return %arg0, %c0_i32 : i32, i32
  }
  func.func @transform_8(%arg0: i32) -> (i32, i32) {
    %c0_i32 = arith.constant 0 : i32
    %c0_i32_0 = arith.constant 0 : i32
    return %arg0, %c0_i32 : i32, i32
  }
}

</mosaic_0001>

<llo_original>
// kernel: tpu_custom_call.1
$region0: #{tpu_custom_call.1}
  #allocation0 [shape = 'u32[]', space=smem, size = 0x4, offset = 0x4, fixed_abs, tag = 'smem constant byte address 0x4 - core index']
  #allocation1 [shape = 'u32[144,128]{1,0:T(1,128)}', space=vmem, size = 0x12000, scoped, tag = 'internal scratch']
  %s0 = inlined_call_operand.hbm [shape: bf16[16,16], index: 0, kind: input, shape index: {}]
  %s1 = inlined_call_operand.hbm [shape: bf16[16,32], index: 1, kind: input, shape index: {}]
  %s2 = inlined_call_operand.hbm [shape: bf16[16,128], index: 2, kind: input, shape index: {}]
  %s3 = inlined_call_operand.hbm [shape: bf16[32,128], index: 3, kind: input, shape index: {}]
  %s4 = inlined_call_operand.vmem [shape: f32[1,128], index: 4, kind: input, shape index: {}]
  %s5 = inlined_call_operand.hbm [shape: bf16[128,256], index: 5, kind: input, shape index: {}]
  %s6 = inlined_call_operand.vmem [shape: f32[1,256], index: 6, kind: input, shape index: {}]
  %s7 = inlined_call_operand.hbm [shape: bf16[16,128], index: 7, kind: output, shape index: {0}]
  %s8 = inlined_call_operand.hbm [shape: bf16[16,256], index: 8, kind: output, shape index: {1}]
  %9 = xla_tuple %s7, %s8
  %s10 = sld [smem:[#allocation0]]
  $region66: #{tpu_custom_call.1} parent=0
    _
  %s12 = ssub.s32 1, %s10
  %s13 = scalar_select 0, %s12, %s10
  $region1: #{tpu_custom_call.1} parent=0
    #allocation2 [shape = 'u8[4096]{0}', space=vmem, size = 0x1000, scoped, tag = 'input window, operand 0, single buffered']
    #allocation3 [shape = 's32[1]{0}', space=sflag, size = 0x4, scoped, tag = 'scoped memory for tpu_custom_call.1']
    #allocation4 [shape = 's32[1]{0}', space=sflag, size = 0x4, scoped, tag = 'scoped memory for tpu_custom_call.1']
    #allocation5 [shape = 'u8[4096]{0}', space=vmem, size = 0x1000, scoped, tag = 'input window, operand 1, single buffered']
    #allocation6 [shape = 's32[1]{0}', space=sflag, size = 0x4, scoped, tag = 'scoped memory for tpu_custom_call.1']
    #allocation7 [shape = 'u8[4096]{0}', space=vmem, size = 0x1000, scoped, tag = 'input window, operand 2, single buffered']
    #allocation8 [shape = 'u8[8192]{0}', space=vmem, size = 0x2000, scoped, tag = 'input window, operand 3, single buffered']
    #allocation9 [shape = 's32[1]{0}', space=sflag, size = 0x4, scoped, tag = 'scoped memory for tpu_custom_call.1']
    #allocation10 [shape = 'u8[65536]{0}', space=vmem, size = 0x10000, scoped, tag = 'input window, operand 5, single buffered']
    #allocation11 [shape = 'u8[4096]{0}', space=vmem, size = 0x1000, scoped, tag = 'output window, operand 0, single buffered']
    #allocation12 [shape = 'u8[8192]{0}', space=vmem, size = 0x2000, scoped, tag = 'output window, operand 1, single buffered']
    #allocation13 [shape = 's32[1]{0}', space=sflag, size = 0x4, scoped, tag = 'scoped memory for tpu_custom_call.1']
    %14 = vsyncpa [#allocation3], 0
    %15 = vsyncpa [#allocation6], 0
    %16 = vsyncpa [#allocation9], 0
    %17 = vsyncpa [#allocation4], 0
    %18 = vsyncpa [#allocation13], 0
    // Predicated region
    $region2: #{tpu_custom_call.1} parent=1 // pred_check
      _
    $region3: #{tpu_custom_call.1} parent=1 // pred_check_branch
      %20 = sbr.rel (0) target = $region5
    $region4: #{tpu_custom_call.1} parent=1 // pred_region
      %s22 = ssub.s32 128, 128
      %23 = vsyncadd [#allocation3], %s22
      %s24 = sshll.u32 [#allocation2], 4
      %s25 = int_to_ptr.vmem [resolvable:$true] %s24
      %30 = dma.hbm_to_vmem [thread:$0]  %s0, 128, %s25, [#allocation3], 64, 64, 4
    $region5: #{tpu_custom_call.1} parent=1 // pred_fallthru
      _
    // Predicated region
    $region6: #{tpu_custom_call.1} parent=1 // pred_check
      _
    $region7: #{tpu_custom_call.1} parent=1 // pred_check_branch
      %32 = sbr.rel (0) target = $region9
    $region8: #{tpu_custom_call.1} parent=1 // pred_region
      %s34 = ssub.s32 128, 128
      %35 = vsyncadd [#allocation6], %s34
      %s36 = sshll.u32 [#allocation5], 4
      %s37 = int_to_ptr.vmem [resolvable:$true] %s36
      %42 = dma.hbm_to_vmem [thread:$0]  %s1, 128, %s37, [#allocation6], 64, 64, 4
    $region9: #{tpu_custom_call.1} parent=1 // pred_fallthru
      _
    // Predicated region
    $region10: #{tpu_custom_call.1} parent=1 // pred_check
      _
    $region11: #{tpu_custom_call.1} parent=1 // pred_check_branch
      %44 = sbr.rel (0) target = $region13
    $region12: #{tpu_custom_call.1} parent=1 // pred_region
      %s46 = ssub.s32 128, 128
      %47 = vsyncadd [#allocation6], %s46
      %s48 = sshll.u32 [#allocation7], 4
      %s49 = int_to_ptr.vmem [resolvable:$true] %s48
      %54 = dma.hbm_to_vmem [thread:$0]  %s2, 128, %s49, [#allocation6], 64, 64, 4
    $region13: #{tpu_custom_call.1} parent=1 // pred_fallthru
      _
    // Predicated region
    $region14: #{tpu_custom_call.1} parent=1 // pred_check
      _
    $region15: #{tpu_custom_call.1} parent=1 // pred_check_branch
      %56 = sbr.rel (0) target = $region17
    $region16: #{tpu_custom_call.1} parent=1 // pred_region
      %s58 = ssub.s32 256, 256
      %59 = vsyncadd [#allocation9], %s58
      %s60 = sshll.u32 [#allocation8], 4
      %s61 = int_to_ptr.vmem [resolvable:$true] %s60
      %66 = dma.hbm_to_vmem [thread:$0]  %s3, 256, %s61, [#allocation9], 64, 64, 4
    $region17: #{tpu_custom_call.1} parent=1 // pred_fallthru
      _
    // Predicated region
    $region18: #{tpu_custom_call.1} parent=1 // pred_check
      _
    $region19: #{tpu_custom_call.1} parent=1 // pred_check_branch
      %68 = sbr.rel (0) target = $region21
    $region20: #{tpu_custom_call.1} parent=1 // pred_region
      _
    $region21: #{tpu_custom_call.1} parent=1 // pred_fallthru
      _
    // Predicated region
    $region22: #{tpu_custom_call.1} parent=1 // pred_check
      _
    $region23: #{tpu_custom_call.1} parent=1 // pred_check_branch
      %70 = sbr.rel (0) target = $region25
    $region24: #{tpu_custom_call.1} parent=1 // pred_region
      %s72 = ssub.s32 2048, 2048
      %73 = vsyncadd [#allocation9], %s72
      %s74 = sshll.u32 [#allocation10], 4
      %s75 = int_to_ptr.vmem [resolvable:$true] %s74
      %80 = dma.hbm_to_vmem [thread:$0]  %s5, 2048, %s75, [#allocation9], 128, 128, 8
    $region25: #{tpu_custom_call.1} parent=1 // pred_fallthru
      _
    // Predicated region
    $region26: #{tpu_custom_call.1} parent=1 // pred_check
      _
    $region27: #{tpu_custom_call.1} parent=1 // pred_check_branch
      %82 = sbr.rel (0) target = $region29
    $region28: #{tpu_custom_call.1} parent=1 // pred_region
      _
    $region29: #{tpu_custom_call.1} parent=1 // pred_fallthru
      _
    // Predicated region
    $region30: #{tpu_custom_call.1} parent=1 // pred_check
      _
    $region31: #{tpu_custom_call.1} parent=1 // pred_check_branch
      %84 = sbr.rel (0) target = $region33
    $region32: #{tpu_custom_call.1} parent=1 // pred_region
      %85 = dma.done [#allocation3], 128
    $region33: #{tpu_custom_call.1} parent=1 // pred_fallthru
      _
    // Predicated region
    $region34: #{tpu_custom_call.1} parent=1 // pred_check
      _
    $region35: #{tpu_custom_call.1} parent=1 // pred_check_branch
      %87 = sbr.rel (0) target = $region37
    $region36: #{tpu_custom_call.1} parent=1 // pred_region
      %88 = dma.done [#allocation6], 128
    $region37: #{tpu_custom_call.1} parent=1 // pred_fallthru
      _
    // Predicated region
    $region38: #{tpu_custom_call.1} parent=1 // pred_check
      _
    $region39: #{tpu_custom_call.1} parent=1 // pred_check_branch
      %90 = sbr.rel (0) target = $region41
    $region40: #{tpu_custom_call.1} parent=1 // pred_region
      %91 = dma.done [#allocation6], 128
    $region41: #{tpu_custom_call.1} parent=1 // pred_fallthru
      _
    // Predicated region
    $region42: #{tpu_custom_call.1} parent=1 // pred_check
      _
    $region43: #{tpu_custom_call.1} parent=1 // pred_check_branch
      %93 = sbr.rel (0) target = $region45
    $region44: #{tpu_custom_call.1} parent=1 // pred_region
      %94 = dma.done [#allocation9], 256
    $region45: #{tpu_custom_call.1} parent=1 // pred_fallthru
      _
    // Predicated region
    $region46: #{tpu_custom_call.1} parent=1 // pred_check
      _
    $region47: #{tpu_custom_call.1} parent=1 // pred_check_branch
      %96 = sbr.rel (0) target = $region49
    $region48: #{tpu_custom_call.1} parent=1 // pred_region
      %97 = dma.done [#allocation9], 2048
    $region49: #{tpu_custom_call.1} parent=1 // pred_fallthru
      _
    %v99 = vld [vmem:[#allocation2] sm:$0xf]
    %v100 = vld [vmem:[#allocation2 + $0x4] sm:$0xf]
    %v101 = vld [vmem:[#allocation7] sm:$0xf]
    %v102 = vld [vmem:[#allocation7 + $0x4] sm:$0xf]
    %v103 = vld [vmem:[#allocation5] sm:$0xf]
    %v104 = vld [vmem:[#allocation5 + $0x4] sm:$0xf]
    %v105 = vld [vmem:[#allocation8] sm:$0xf]
    %v106 = vld [vmem:[#allocation8 + $0x4] sm:$0xf]
    %v107 = vld [vmem:[#allocation8 + $0x8] sm:$0xf]
    %v108 = vld [vmem:[#allocation8 + $0xc] sm:$0xf]
    %v111 = vunpack.c.l.b16 %v103
    %v112 = vunpack.c.l.b16 %v104
    %v113 = vpack.c.b16 %v112, %v111
    %v118 = vunpack.c.l.b16 %v105
    %v119 = vunpack.c.l.b16 %v106
    %v120 = vunpack.c.l.b16 %v107
    %v121 = vunpack.c.l.b16 %v108
    %v122 = vpack.c.b16 %v119, %v118
    %v123 = vpack.c.b16 %v121, %v120
    %vm126 = vcmask 261120
    %v128 = vsel %vm126, %v113, 0
    %130 = vmatprep.subr.bf16.mxu0 0
    %131 = vmatpush1.bf16.msra.mxu0 0
    %132 = vmatprep.subr.bf16.mxu0 0
    %133 = vmatpush1.bf16.msra.mxu0 0
    %134 = vmatprep.subr.bf16.mxu0 0
    %135 = vmatpush1.bf16.msra.mxu0 0
    %136 = vmatprep.subr.bf16.mxu0 0
    %137 = vmatpush1.bf16.msra.mxu0 0
    %138 = vmatprep.subr.bf16.mxu0 0
    %139 = vmatpush1.bf16.msra.mxu0 0
    %140 = vmatprep.subr.bf16.mxu0 0
    %141 = vmatpush1.bf16.msra.mxu0 0
    %142 = vmatprep.subr.bf16.mxu0 0
    %143 = vmatpush1.bf16.msra.mxu0 %v123
    %144 = vmatprep.subr.bf16.mxu0 0
    %145 = vmatpush1.bf16.msra.mxu0 %v122
    %146 = vmatprep.subr.bf16.mxu0 0
    %147 = vmatpush2.bf16.msra.mxu0 0
    %148 = vmatprep.subr.bf16.mxu0 0
    %149 = vmatpush2.bf16.msra.mxu0 0
    %150 = vmatprep.subr.bf16.mxu0 0
    %151 = vmatpush2.bf16.msra.mxu0 0
    %152 = vmatprep.subr.bf16.mxu0 0
    %153 = vmatpush2.bf16.msra.mxu0 0
    %154 = vmatprep.subr.bf16.mxu0 0
    %155 = vmatpush2.bf16.msra.mxu0 0
    %156 = vmatprep.subr.bf16.mxu0 0
    %157 = vmatpush2.bf16.msra.mxu0 0
    %158 = vmatprep.subr.bf16.mxu0 0
    %159 = vmatpush2.bf16.msra.mxu0 0
    %160 = vmatprep.subr.bf16.mxu0 0
    %161 = vmatpush2.bf16.msra.mxu0 0
    %162 = vmatprep.mubr.bf16.mxu0 0
    %163 = vmatmul.mubr.bf16.gmra.mxu0 %v128
    %v164 = vpop.f32.mrf.mxu0
    %v165 = vadd.f32 0.0, %v164
    %v166 = vpop.f32.mrf.mxu0
    %v167 = vpop.f32.mrf.mxu0
    %v168 = vadd.f32 0.0, %v167
    %v169 = vpop.f32.mrf.mxu0
    %170 = vdwg.mxu0
    %v173 = vunpack.c.l.b16 %v99
    %v174 = vunpack.c.l.b16 %v100
    %v175 = vpack.c.b16 %v174, %v173
    %v178 = vunpack.c.l.b16 %v101
    %v179 = vunpack.c.l.b16 %v102
    %v180 = vpack.c.b16 %v179, %v178
    %vm182 = vcmask 130048
    %v184 = vsel %vm182, %v175, 0
    %186 = vmatprep.subr.bf16.mxu0 0
    %187 = vmatpush1.bf16.msra.mxu0 0
    %188 = vmatprep.subr.bf16.mxu0 0
    %189 = vmatpush1.bf16.msra.mxu0 0
    %190 = vmatprep.subr.bf16.mxu0 0
    %191 = vmatpush1.bf16.msra.mxu0 0
    %192 = vmatprep.subr.bf16.mxu0 0
    %193 = vmatpush1.bf16.msra.mxu0 0
    %194 = vmatprep.subr.bf16.mxu0 0
    %195 = vmatpush1.bf16.msra.mxu0 0
    %196 = vmatprep.subr.bf16.mxu0 0
    %197 = vmatpush1.bf16.msra.mxu0 0
    %198 = vmatprep.subr.bf16.mxu0 0
    %199 = vmatpush1.bf16.msra.mxu0 0
    %200 = vmatprep.subr.bf16.mxu0 0
    %201 = vmatpush1.bf16.msra.mxu0 %v180
    %202 = vmatprep.subr.bf16.mxu0 0
    %203 = vmatpush2.bf16.msra.mxu0 0
    %204 = vmatprep.subr.bf16.mxu0 0
    %205 = vmatpush2.bf16.msra.mxu0 0
    %206 = vmatprep.subr.bf16.mxu0 0
    %207 = vmatpush2.bf16.msra.mxu0 0
    %208 = vmatprep.subr.bf16.mxu0 0
    %209 = vmatpush2.bf16.msra.mxu0 0
    %210 = vmatprep.subr.bf16.mxu0 0
    %211 = vmatpush2.bf16.msra.mxu0 0
    %212 = vmatprep.subr.bf16.mxu0 0
    %213 = vmatpush2.bf16.msra.mxu0 0
    %214 = vmatprep.subr.bf16.mxu0 0
    %215 = vmatpush2.bf16.msra.mxu0 0
    %216 = vmatprep.subr.bf16.mxu0 0
    %217 = vmatpush2.bf16.msra.mxu0 0
    %218 = vmatprep.mubr.bf16.mxu0 0
    %219 = vmatmul.mubr.bf16.gmra.mxu0 %v184
    %v220 = vpop.f32.mrf.mxu0
    %v221 = vadd.f32 %v165, %v220
    %v222 = vpop.f32.mrf.mxu0
    %v223 = vpop.f32.mrf.mxu0
    %v224 = vadd.f32 %v168, %v223
    %v225 = vpop.f32.mrf.mxu0
    %226 = vdwg.mxu0
    %v227 = vld [vmem:[%s4] sm:$0x1]
    %v229 = vlaneseq
    %v230 = vshrl.u32 %v229, 7
    %v231 = vsub.s32 0, %v230
    %v232 = vrot.slane %v227, %v231
    %v234 = vadd.f32 %v221, %v232
    %v235 = vadd.f32 %v224, %v232
    %v236 = vpack.c.bf16 %v235, %v234
    %v238 = vunpack.c.l.b16 %v236
    %v239 = vunpack.c.h.b16 %v236
    %v240 = vpack.c.b16 %v238, %v238
    %v241 = vpack.c.b16 %v239, %v239
    %244 = vst [vmem:[#allocation11] sm:$0xf] %v240
    %245 = vst [vmem:[#allocation11 + $0x4] sm:$0xf] %v241
    %v246 = vmax.f32 %v234, 0.0
    %v247 = vmax.f32 %v235, 0.0
    %v248 = vpack.c.bf16 %v247, %v246
    %v249 = vld [vmem:[#allocation10] sm:$0xff]
    %v250 = vld [vmem:[#allocation10 + $0x8] sm:$0xff]
    %v251 = vld [vmem:[#allocation10 + $0x10] sm:$0xff]
    %v252 = vld [vmem:[#allocation10 + $0x18] sm:$0xff]
    %v253 = vld [vmem:[#allocation10 + $0x20] sm:$0xff]
    %v254 = vld [vmem:[#allocation10 + $0x28] sm:$0xff]
    %v255 = vld [vmem:[#allocation10 + $0x30] sm:$0xff]
    %v256 = vld [vmem:[#allocation10 + $0x38] sm:$0xff]
    %v257 = vld [vmem:[#allocation10 + $0x40] sm:$0xff]
    %v258 = vld [vmem:[#allocation10 + $0x48] sm:$0xff]
    %v259 = vld [vmem:[#allocation10 + $0x50] sm:$0xff]
    %v260 = vld [vmem:[#allocation10 + $0x58] sm:$0xff]
    %v261 = vld [vmem:[#allocation10 + $0x60] sm:$0xff]
    %v262 = vld [vmem:[#allocation10 + $0x68] sm:$0xff]
    %v263 = vld [vmem:[#allocation10 + $0x70] sm:$0xff]
    %v264 = vld [vmem:[#allocation10 + $0x78] sm:$0xff]
    %v265 = vld [vmem:[%s6] sm:$0x3]
    %v267 = vlaneseq
    %v268 = vshrl.u32 %v267, 7
    %v269 = vsub.s32 0, %v268
    %v270 = vrot.slane %v265, %v269
    %v271 = vlaneseq
    %v272 = vshrl.u32 %v271, 7
    %v273 = vsub.s32 1, %v272
    %v274 = vrot.slane %v265, %v273
    %v293 = vunpack.c.l.b16 %v249
    %v294 = vunpack.c.h.b16 %v249
    %v295 = vunpack.c.l.b16 %v250
    %v296 = vunpack.c.h.b16 %v250
    %v297 = vunpack.c.l.b16 %v251
    %v298 = vunpack.c.h.b16 %v251
    %v299 = vunpack.c.l.b16 %v252
    %v300 = vunpack.c.h.b16 %v252
    %v301 = vunpack.c.l.b16 %v253
    %v302 = vunpack.c.h.b16 %v253
    %v303 = vunpack.c.l.b16 %v254
    %v304 = vunpack.c.h.b16 %v254
    %v305 = vunpack.c.l.b16 %v255
    %v306 = vunpack.c.h.b16 %v255
    %v307 = vunpack.c.l.b16 %v256
    %v308 = vunpack.c.h.b16 %v256
    %v309 = vunpack.c.l.b16 %v257
    %v310 = vunpack.c.h.b16 %v257
    %v311 = vunpack.c.l.b16 %v258
    %v312 = vunpack.c.h.b16 %v258
    %v313 = vunpack.c.l.b16 %v259
    %v314 = vunpack.c.h.b16 %v259
    %v315 = vunpack.c.l.b16 %v260
    %v316 = vunpack.c.h.b16 %v260
    %v317 = vunpack.c.l.b16 %v261
    %v318 = vunpack.c.h.b16 %v261
    %v319 = vunpack.c.l.b16 %v262
    %v320 = vunpack.c.h.b16 %v262
    %v321 = vunpack.c.l.b16 %v263
    %v322 = vunpack.c.h.b16 %v263
    %v323 = vunpack.c.l.b16 %v264
    %v324 = vunpack.c.h.b16 %v264
    %v325 = vpack.c.b16 %v295, %v293
    %v326 = vpack.c.b16 %v296, %v294
    %v327 = vpack.c.b16 %v299, %v297
    %v328 = vpack.c.b16 %v300, %v298
    %v329 = vpack.c.b16 %v303, %v301
    %v330 = vpack.c.b16 %v304, %v302
    %v331 = vpack.c.b16 %v307, %v305
    %v332 = vpack.c.b16 %v308, %v306
    %v333 = vpack.c.b16 %v311, %v309
    %v334 = vpack.c.b16 %v312, %v310
    %v335 = vpack.c.b16 %v315, %v313
    %v336 = vpack.c.b16 %v316, %v314
    %v337 = vpack.c.b16 %v319, %v317
    %v338 = vpack.c.b16 %v320, %v318
    %v339 = vpack.c.b16 %v323, %v321
    %v340 = vpack.c.b16 %v324, %v322
    %357 = vmatprep.subr.bf16.mxu0 %v340
    %358 = vmatpush1.bf16.msra.mxu0 %v339
    %359 = vmatprep.subr.bf16.mxu0 %v338
    %360 = vmatpush1.bf16.msra.mxu0 %v337
    %361 = vmatprep.subr.bf16.mxu0 %v336
    %362 = vmatpush1.bf16.msra.mxu0 %v335
    %363 = vmatprep.subr.bf16.mxu0 %v334
    %364 = vmatpush1.bf16.msra.mxu0 %v333
    %365 = vmatprep.subr.bf16.mxu0 %v332
    %366 = vmatpush1.bf16.msra.mxu0 %v331
    %367 = vmatprep.subr.bf16.mxu0 %v330
    %368 = vmatpush1.bf16.msra.mxu0 %v329
    %369 = vmatprep.subr.bf16.mxu0 %v328
    %370 = vmatpush1.bf16.msra.mxu0 %v327
    %371 = vmatprep.subr.bf16.mxu0 %v326
    %372 = vmatpush1.bf16.msra.mxu0 %v325
    %373 = vmatprep.subr.bf16.mxu0 0
    %374 = vmatpush2.bf16.msra.mxu0 0
    %375 = vmatprep.subr.bf16.mxu0 0
    %376 = vmatpush2.bf16.msra.mxu0 0
    %377 = vmatprep.subr.bf16.mxu0 0
    %378 = vmatpush2.bf16.msra.mxu0 0
    %379 = vmatprep.subr.bf16.mxu0 0
    %380 = vmatpush2.bf16.msra.mxu0 0
    %381 = vmatprep.subr.bf16.mxu0 0
    %382 = vmatpush2.bf16.msra.mxu0 0
    %383 = vmatprep.subr.bf16.mxu0 0
    %384 = vmatpush2.bf16.msra.mxu0 0
    %385 = vmatprep.subr.bf16.mxu0 0
    %386 = vmatpush2.bf16.msra.mxu0 0
    %387 = vmatprep.subr.bf16.mxu0 0
    %388 = vmatpush2.bf16.msra.mxu0 0
    %389 = vmatprep.mubr.bf16.mxu0 0
    %390 = vmatmul.mubr.bf16.gmra.mxu0 %v248
    %v391 = vpop.f32.mrf.mxu0
    %v392 = vadd.f32 %v270, %v391
    %v393 = vpop.f32.mrf.mxu0
    %v394 = vadd.f32 %v274, %v393
    %v395 = vpop.f32.mrf.mxu0
    %v396 = vadd.f32 %v270, %v395
    %v397 = vpop.f32.mrf.mxu0
    %v398 = vadd.f32 %v274, %v397
    %399 = vdwg.mxu0
    %v400 = vpack.c.bf16 %v396, %v392
    %v401 = vpack.c.bf16 %v398, %v394
    %v404 = vunpack.c.l.b16 %v400
    %v405 = vunpack.c.l.b16 %v401
    %v406 = vunpack.c.h.b16 %v400
    %v407 = vunpack.c.h.b16 %v401
    %v408 = vpack.c.b16 %v405, %v404
    %v409 = vpack.c.b16 %v407, %v406
    %412 = vst [vmem:[#allocation12] sm:$0xff] %v408
    %413 = vst [vmem:[#allocation12 + $0x8] sm:$0xff] %v409
    // Predicated region
    $region50: #{tpu_custom_call.1} parent=1 // pred_check
      _
    $region51: #{tpu_custom_call.1} parent=1 // pred_check_branch
      %415 = sbr.rel (0) target = $region53
    $region52: #{tpu_custom_call.1} parent=1 // pred_region
      %s417 = ssub.s32 128, 128
      %418 = vsyncadd [#allocation4], %s417
      %s419 = sshll.u32 [#allocation11], 4
      %s420 = int_to_ptr.vmem [resolvable:$true] %s419
      %425 = dma.vmem_to_hbm [thread:$0]  %s420, 128, %s7, [#allocation4], 64, 64, 4
    $region53: #{tpu_custom_call.1} parent=1 // pred_fallthru
      _
    // Predicated region
    $region54: #{tpu_custom_call.1} parent=1 // pred_check
      _
    $region55: #{tpu_custom_call.1} parent=1 // pred_check_branch
      %427 = sbr.rel (0) target = $region57
    $region56: #{tpu_custom_call.1} parent=1 // pred_region
      %s429 = ssub.s32 256, 256
      %430 = vsyncadd [#allocation13], %s429
      %s431 = sshll.u32 [#allocation12], 4
      %s432 = int_to_ptr.vmem [resolvable:$true] %s431
      %437 = dma.vmem_to_hbm [thread:$0]  %s432, 256, %s8, [#allocation13], 128, 128, 8
    $region57: #{tpu_custom_call.1} parent=1 // pred_fallthru
      _
    // Predicated region
    $region58: #{tpu_custom_call.1} parent=1 // pred_check
      _
    $region59: #{tpu_custom_call.1} parent=1 // pred_check_branch
      %439 = sbr.rel (0) target = $region61
    $region60: #{tpu_custom_call.1} parent=1 // pred_region
      %440 = dma.done [#allocation4], 128
    $region61: #{tpu_custom_call.1} parent=1 // pred_fallthru
      _
    // Predicated region
    $region62: #{tpu_custom_call.1} parent=1 // pred_check
      _
    $region63: #{tpu_custom_call.1} parent=1 // pred_check_branch
      %442 = sbr.rel (0) target = $region65
    $region64: #{tpu_custom_call.1} parent=1 // pred_region
      %443 = dma.done [#allocation13], 256
    $region65: #{tpu_custom_call.1} parent=1 // pred_fallthru
      _
    %444 = vsyncpa [#allocation3], 1
    %445 = vsyncpa [#allocation6], 1
    %446 = vsyncpa [#allocation9], 1
    %447 = vsyncpa [#allocation4], 1
    %448 = vsyncpa [#allocation13], 1

</llo_original>
